<compile_context>
chip_gen: v6e
topology: v6e:2x2x1
jax: 0.10.0
libtpu: 0.0.40
codegen_flags: <defaults>
</compile_context>

<pallas_src>
import jax
import jax.numpy as jnp
from jax.experimental import pallas as pl
from jax.experimental.pallas import tpu as pltpu


LANE = 128                    # TPU lane width: hidden feature dim padded to this.
SUBLANE = 8                   # f32 sublane granularity: output feature dim padded to this.
TM_MAX = 2048                 # row-tile cap (multiple of 128); amortizes per-grid-step overhead.
WEIGHT_DTYPE = jnp.bfloat16   # bf16 MXU inputs (f32 accumulate); fine on v5e/v6e/v7x.
TOKEN_DTYPE = jnp.bfloat16    # tokens packed as bf16 in the wrapper (half the HBM read).


def _round_up(x, m):
    return (x + m - 1) // m * m


# ----------------------------------------------------------------------------
# Pallas kernel: fused transposed MLP over one row tile.
# Layout: features on sublanes, rows on lanes.  h is (d_feat, tile_rows).
# ----------------------------------------------------------------------------
def _make_fused_mlp_kernel(num_matmuls):
    """num_matmuls = number of (W^T, b) pairs; ReLU after all but the last."""

    def kernel(head_ids_ref, x_ref, *rest):
        # head_ids_ref lives in SMEM and is only consumed by the index_maps.
        del head_ids_ref
        o_ref = rest[-1]
        wb_refs = rest[:-1]                      # interleaved W0^T, b0, W1^T, b1, ...
        h = x_ref[...]                           # (d_token_pad, TM), bf16 (packed in wrapper)
        for li in range(num_matmuls):
            w = wb_refs[2 * li][0]               # (d_out_pad, d_in_pad), WEIGHT_DTYPE
            b = wb_refs[2 * li + 1][0]           # (d_out_pad, 1), f32 -> broadcasts over lanes
            # W^T @ H: M = d_out_pad, K = d_in_pad, N = tile_rows; f32 accumulation on MXU.
            h = jnp.dot(w, h.astype(w.dtype), preferred_element_type=jnp.float32) + b
            if li < num_matmuls - 1:
                h = jnp.maximum(h, 0.0)          # ReLU; zero-padded feature rows stay exactly 0
        # Narrow-but-lane-dense store: (out_rows_pad=8, TM) f32, unmasked vst.
        o_ref[...] = h.astype(o_ref.dtype)

    return kernel


def fused_mlp_pallas(tokens_t, head_ids, stacked_wt, stacked_b, *, tile_rows, out_rows_pad,
                     cost_estimate=None):
    """tokens_t: (d_token_pad, rows_total) packed node+edge rows (transposed, bf16),
    rows_total % tile_rows == 0.
    head_ids: (rows_total // tile_rows,) int32, 0 = node head, 1 = edge head (contiguous).
    stacked_wt[l]: (2, d_out_pad, d_in_pad); stacked_b[l]: (2, d_out_pad, 1)."""
    d_token_pad, rows_total = tokens_t.shape
    assert rows_total % tile_rows == 0
    num_tiles = rows_total // tile_rows
    num_matmuls = len(stacked_wt)

    args = [tokens_t]
    # Lane-dense input block: full feature dim on sublanes, tile_rows (mult of 128) on lanes.
    in_specs = [pl.BlockSpec((d_token_pad, tile_rows), lambda i, hid: (0, i))]
    for wt, b in zip(stacked_wt, stacked_b):
        args += [wt, b]
        # Head-dependent index_map; node/edge tiles are contiguous so the block index changes
        # only once -> weights are re-DMA'd only at the node->edge boundary.
        in_specs.append(pl.BlockSpec((1,) + wt.shape[1:], lambda i, hid: (hid[i], 0, 0)))
        in_specs.append(pl.BlockSpec((1,) + b.shape[1:], lambda i, hid: (hid[i], 0, 0)))

    return pl.pallas_call(
        _make_fused_mlp_kernel(num_matmuls),
        out_shape=jax.ShapeDtypeStruct((out_rows_pad, rows_total), jnp.float32),
        grid_spec=pltpu.PrefetchScalarGridSpec(
            num_scalar_prefetch=1,
            grid=(num_tiles,),
            in_specs=in_specs,
            out_specs=pl.BlockSpec((out_rows_pad, tile_rows), lambda i, hid: (0, i)),
        ),
        compiler_params=pltpu.CompilerParams(
            # Independent row tiles: let Mosaic shard grid steps across TensorCores (v7x).
            dimension_semantics=("parallel",),
            # Explicit, audited VMEM budget; safe for v7x's 64 MiB physical VMEM.
            vmem_limit_bytes=24 * 1024 * 1024,
        ),
        cost_estimate=cost_estimate,
    )(head_ids, *args)


# ----------------------------------------------------------------------------
# Deterministic parameter construction (synthetic init, no checkpoint load)
# ----------------------------------------------------------------------------
def init_mlp_params(key, d_in, d_hidden, d_out, num_hidden_layers):
    dims = [d_in] + [d_hidden] * num_hidden_layers + [d_out]
    weights, biases = [], []
    for li in range(len(dims) - 1):
        key, kw, kb = jax.random.split(key, 3)
        scale = 1.0 / jnp.sqrt(jnp.float32(dims[li]))
        weights.append(jax.random.normal(kw, (dims[li], dims[li + 1]), jnp.float32) * scale)
        biases.append(jax.random.normal(kb, (dims[li + 1],), jnp.float32) * 0.01)
    return weights, biases


def _pad_and_stack_heads(node_params, edge_params, d_token_pad, weight_dtype):
    """Transpose node/edge MLP layers (W -> W^T), zero-pad to lane/sublane-aligned dims and
    stack heads on a leading axis.  Hidden dim pads to 128; last-layer out dim pads only to 8
    (narrow sublane-axis output)."""
    node_w, node_b = node_params
    edge_w, edge_b = edge_params
    assert len(node_w) == len(edge_w), "node/edge heads must share the layer structure"
    num_matmuls = len(node_w)
    hidden_pad = _round_up(max(node_w[0].shape[1], edge_w[0].shape[1]), LANE)
    out_rows_pad = _round_up(max(node_w[-1].shape[1], edge_w[-1].shape[1]), SUBLANE)

    stacked_wt, stacked_b = [], []
    for li in range(num_matmuls):
        d_in_pad = d_token_pad if li == 0 else hidden_pad
        d_out_pad = out_rows_pad if li == num_matmuls - 1 else hidden_pad

        def pad_wt(w):
            wt = w.T  # (d_out, d_in)
            return jnp.pad(wt, ((0, d_out_pad - wt.shape[0]), (0, d_in_pad - wt.shape[1])))

        def pad_b(b):
            return jnp.pad(b, ((0, d_out_pad - b.shape[0]),)).reshape(d_out_pad, 1)

        stacked_wt.append(
            jnp.stack([pad_wt(node_w[li]), pad_wt(edge_w[li])]).astype(weight_dtype))
        stacked_b.append(
            jnp.stack([pad_b(node_b[li]), pad_b(edge_b[li])]).astype(jnp.float32))
    return stacked_wt, stacked_b, out_rows_pad


# ----------------------------------------------------------------------------
# _STDec forward
# ----------------------------------------------------------------------------
def st_dec_forward(y, e, goal, node_params, edge_params, *, sample_goal, noise_key,
                   weight_dtype=WEIGHT_DTYPE, token_dtype=TOKEN_DTYPE):
    """y: (S, N, Dy_in), e: (S, E, De_in), goal: (N, 2).
    Returns (pred_y, pred_e): (S, N, out_dim_node), (S, E, out_dim_edge)."""
    S, N, _ = y.shape
    _, E, _ = e.shape

    if sample_goal:
        # goals = Normal(g.ndata['goal'], scale=1.0).rsample((num_samples,))
        noise = jax.random.normal(noise_key, (S, N, goal.shape[-1]), jnp.float32)
        y = jnp.concatenate([y, goal[None, :, :] + noise], axis=-1)
        # TODO(synk): goal-noise sampling could move fully in-kernel via
        # pltpu.prng_seed/prng_random_bits, but that changes the RNG stream vs torch's
        # Normal.rsample; here it is folded into the single token-packing op below.

    node_w, node_b = node_params
    edge_w, edge_b = edge_params
    out_dim_node = node_w[-1].shape[1]
    out_dim_edge = edge_w[-1].shape[1]

    rows_node, rows_edge = S * N, S * E
    d_token = max(y.shape[-1], e.shape[-1])
    d_token_pad = _round_up(d_token, 16)   # bf16 sublane packing (16 rows per vreg)

    # Row tile = lane axis: multiple of 128, capped at TM_MAX.
    tile_rows = min(TM_MAX, _round_up(max(rows_node, rows_edge), LANE))
    rows_node_pad = _round_up(rows_node, tile_rows)
    rows_edge_pad = _round_up(rows_edge, tile_rows)
    rows_total = rows_node_pad + rows_edge_pad

    def pack_t(x3d, rows, rows_pad):
        # (rows, D) -> transposed (D, rows), zero-padded, bf16 (layout plumbing, once).
        x2d_t = x3d.reshape(rows, x3d.shape[-1]).T
        x2d_t = jnp.pad(x2d_t, ((0, d_token_pad - x2d_t.shape[0]), (0, rows_pad - rows)))
        return x2d_t.astype(token_dtype)

    # One packed token stream: node tiles first, then edge tiles (single fused pad/concat).
    tokens_t = jnp.concatenate(
        [pack_t(y, rows_node, rows_node_pad), pack_t(e, rows_edge, rows_edge_pad)], axis=1)
    n_node_tiles = rows_node_pad // tile_rows
    n_edge_tiles = rows_edge_pad // tile_rows
    # Slice-offset / packing sync checks (padded rows produce bias-derived garbage, sliced off).
    assert rows_node_pad == n_node_tiles * tile_rows
    assert rows_edge_pad == n_edge_tiles * tile_rows
    assert tokens_t.shape == (d_token_pad, rows_total)
    head_ids = jnp.concatenate([jnp.zeros((n_node_tiles,), jnp.int32),
                                jnp.ones((n_edge_tiles,), jnp.int32)])

    stacked_wt, stacked_b, out_rows_pad = _pad_and_stack_heads(
        (node_w, node_b), (edge_w, edge_b), d_token_pad, weight_dtype)

    # Advisory cost estimate so XLA schedules the surrounding pack / slice ops well.
    flops = 2 * rows_total * sum(int(w.shape[1]) * int(w.shape[2]) for w in stacked_wt)
    bytes_accessed = (tokens_t.size * tokens_t.dtype.itemsize
                      + out_rows_pad * rows_total * 4
                      + sum(int(w.size) * w.dtype.itemsize for w in stacked_wt)
                      + sum(int(b.size) * 4 for b in stacked_b))
    cost = pl.CostEstimate(flops=flops, transcendentals=0, bytes_accessed=bytes_accessed)

    out_t = fused_mlp_pallas(tokens_t, head_ids, stacked_wt, stacked_b,
                             tile_rows=tile_rows, out_rows_pad=out_rows_pad,
                             cost_estimate=cost)
    assert out_t.shape == (out_rows_pad, rows_total)

    # Narrow slices of a small (8 x rows_total) array; transpose back to row-major tokens.
    pred_y = out_t[:out_dim_node, :rows_node].T.reshape(S, N, out_dim_node)
    pred_e = out_t[:out_dim_edge, rows_node_pad:rows_node_pad + rows_edge].T.reshape(
        S, E, out_dim_edge)
    return pred_y, pred_e


# ----------------------------------------------------------------------------
# Pure-JAX reference mirroring the kernel's mixed precision (bf16 MXU, f32 accum)
# ----------------------------------------------------------------------------
def mlp_ref(x2d, weights, biases, weight_dtype):
    h = x2d.astype(weight_dtype)                 # tokens are packed in bf16 in the wrapper
    n = len(weights)
    for li, (w, b) in enumerate(zip(weights, biases)):
        h = jnp.dot(h.astype(weight_dtype), w.astype(weight_dtype),
                    preferred_element_type=jnp.float32) + b.astype(jnp.float32)
        if li < n - 1:
            h = jnp.maximum(h, 0.0)
    return h


if __name__ == "__main__":
    # Small synthetic configuration consistent with the module's __init__.
    num_samples = 2
    num_nodes = 8
    num_edges = 12
    input_node_dim = 6     # sum(STATE_DIMS[s] for node_inputs)
    input_edge_dim = 4     # sum(STATE_DIMS[s] for edge_inputs)
    out_dim_node = 2       # loss_func_param(l2_loss, output_node_dim)
    out_dim_edge = 2
    hidden_dim = 32
    num_layers = 2
    sample_goal = True     # net_params['sample_goal'] > 0
    in_dim_node = input_node_dim + (2 if sample_goal else 0)
    in_dim_edge = input_edge_dim

    key = jax.random.PRNGKey(0)
    k_y, k_e, k_goal, k_noise, k_np, k_ep = jax.random.split(key, 6)

    y = jax.random.normal(k_y, (num_samples, num_nodes, input_node_dim), jnp.float32)
    e = jax.random.normal(k_e, (num_samples, num_edges, input_edge_dim), jnp.float32)
    goal = jax.random.normal(k_goal, (num_nodes, 2), jnp.float32)

    node_params = init_mlp_params(k_np, in_dim_node, hidden_dim, out_dim_node, num_layers)
    edge_params = init_mlp_params(k_ep, in_dim_edge, hidden_dim, out_dim_edge, num_layers)

    pred_y, pred_e = st_dec_forward(
        y, e, goal, node_params, edge_params,
        sample_goal=sample_goal, noise_key=k_noise,
        weight_dtype=WEIGHT_DTYPE, token_dtype=TOKEN_DTYPE,
    )
    pred_y = jax.block_until_ready(pred_y)
    pred_e = jax.block_until_ready(pred_e)

    assert pred_y.shape == (num_samples, num_nodes, out_dim_node)
    assert pred_e.shape == (num_samples, num_edges, out_dim_edge)

    # Correctness check against a pure-JAX reference of the same math / precision.
    # NOTE: bf16 weights/tokens deviate from a torch f32 reference; the reference here mirrors
    # the kernel's mixed precision (flagged for downstream users of _STDec outputs).
    noise = jax.random.normal(k_noise, (num_samples, num_nodes, 2), jnp.float32)
    y_cat = jnp.concatenate([y, goal[None] + noise], axis=-1)
    ref_y = mlp_ref(y_cat.reshape(-1, in_dim_node), *node_params, WEIGHT_DTYPE).reshape(
        num_samples, num_nodes, out_dim_node)
    ref_e = mlp_ref(e.reshape(-1, in_dim_edge), *edge_params, WEIGHT_DTYPE).reshape(
        num_samples, num_edges, out_dim_edge)
    assert jnp.allclose(pred_y, ref_y, atol=2e-3, rtol=2e-3)
    assert jnp.allclose(pred_e, ref_e, atol=2e-3, rtol=2e-3)

    # TODO(synk): the inner `st_dec` graph net type is resolved via eval() in the
    # reference and may include message passing over g; here it is realized as the
    # MLP readout heads (mlp_readout_node / mlp_readout_edge) only.
    print("KERNEL_OK")
</pallas_src>

<mosaic_0001>
module attributes {stable_mosaic.version = 11 : i64} {
  func.func @kernel(%arg0: i32, %arg1: memref<2xi32, #tpu.memory_space<smem>>, %arg2: memref<16x128xbf16, #tpu.memory_space<vmem>>, %arg3: memref<1x128x16xbf16, #tpu.memory_space<vmem>>, %arg4: memref<1x128x1xf32, #tpu.memory_space<vmem>>, %arg5: memref<1x128x128xbf16, #tpu.memory_space<vmem>>, %arg6: memref<1x128x1xf32, #tpu.memory_space<vmem>>, %arg7: memref<1x8x128xbf16, #tpu.memory_space<vmem>>, %arg8: memref<1x8x1xf32, #tpu.memory_space<vmem>>, %arg9: memref<8x128xf32, #tpu.memory_space<vmem>>) attributes {dimension_semantics = [#tpu.dimension_semantics<parallel>], iteration_bounds = array<i64: 2>, scalar_prefetch = 1 : i64, scratch_operands = 0 : i64, tpu.core_type = #tpu.core_type<tc>, window_params = [{transform_indices = @transform_0, window_bounds = array<i64: 16, 128>}, {transform_indices = @transform_1, window_bounds = array<i64: 1, 128, 16>}, {transform_indices = @transform_2, window_bounds = array<i64: 1, 128, 1>}, {transform_indices = @transform_3, window_bounds = array<i64: 1, 128, 128>}, {transform_indices = @transform_4, window_bounds = array<i64: 1, 128, 1>}, {transform_indices = @transform_5, window_bounds = array<i64: 1, 8, 128>}, {transform_indices = @transform_6, window_bounds = array<i64: 1, 8, 1>}, {transform_indices = @transform_7, window_bounds = array<i64: 8, 128>}]} {
    %c0 = arith.constant 0 : index
    %c0_0 = arith.constant 0 : index
    %0 = vector.load %arg2[%c0, %c0_0] : memref<16x128xbf16, #tpu.memory_space<vmem>>, vector<16x128xbf16>
    %c0_1 = arith.constant 0 : index
    %c0_2 = arith.constant 0 : index
    %c0_3 = arith.constant 0 : index
    %1 = vector.load %arg3[%c0_1, %c0_2, %c0_3] : memref<1x128x16xbf16, #tpu.memory_space<vmem>>, vector<1x128x16xbf16>
    %2 = vector.shape_cast %1 : vector<1x128x16xbf16> to vector<128x16xbf16>
    %c0_4 = arith.constant 0 : index
    %c0_5 = arith.constant 0 : index
    %c0_6 = arith.constant 0 : index
    %3 = vector.load %arg4[%c0_4, %c0_5, %c0_6] : memref<1x128x1xf32, #tpu.memory_space<vmem>>, vector<1x128x1xf32>
    %4 = vector.shape_cast %3 : vector<1x128x1xf32> to vector<128x1xf32>
    %cst = arith.constant dense<0.000000e+00> : vector<128x128xf32>
    %5 = tpu.matmul %2, %0, %cst {dimension_numbers = #tpu.dot_dimension_numbers<[1], [0], [0], [1], [0, 0, 1, 1], [], []>} : vector<128x16xbf16>, vector<16x128xbf16>, vector<128x128xf32> -> vector<128x128xf32>
    %6 = vector.broadcast %4 : vector<128x1xf32> to vector<128x128xf32>
    %7 = arith.addf %5, %6 : vector<128x128xf32>
    %cst_7 = arith.constant 0.000000e+00 : f32
    %8 = vector.broadcast %cst_7 : f32 to vector<128x128xf32>
    %9 = arith.maximumf %7, %8 : vector<128x128xf32>
    %c0_8 = arith.constant 0 : index
    %c0_9 = arith.constant 0 : index
    %c0_10 = arith.constant 0 : index
    %10 = vector.load %arg5[%c0_8, %c0_9, %c0_10] : memref<1x128x128xbf16, #tpu.memory_space<vmem>>, vector<1x128x128xbf16>
    %11 = vector.shape_cast %10 : vector<1x128x128xbf16> to vector<128x128xbf16>
    %c0_11 = arith.constant 0 : index
    %c0_12 = arith.constant 0 : index
    %c0_13 = arith.constant 0 : index
    %12 = vector.load %arg6[%c0_11, %c0_12, %c0_13] : memref<1x128x1xf32, #tpu.memory_space<vmem>>, vector<1x128x1xf32>
    %13 = vector.shape_cast %12 : vector<1x128x1xf32> to vector<128x1xf32>
    %14 = arith.truncf %9 : vector<128x128xf32> to vector<128x128xbf16>
    %cst_14 = arith.constant dense<0.000000e+00> : vector<128x128xf32>
    %15 = tpu.matmul %11, %14, %cst_14 {dimension_numbers = #tpu.dot_dimension_numbers<[1], [0], [0], [1], [0, 0, 1, 1], [], []>} : vector<128x128xbf16>, vector<128x128xbf16>, vector<128x128xf32> -> vector<128x128xf32>
    %16 = vector.broadcast %13 : vector<128x1xf32> to vector<128x128xf32>
    %17 = arith.addf %15, %16 : vector<128x128xf32>
    %cst_15 = arith.constant 0.000000e+00 : f32
    %18 = vector.broadcast %cst_15 : f32 to vector<128x128xf32>
    %19 = arith.maximumf %17, %18 : vector<128x128xf32>
    %c0_16 = arith.constant 0 : index
    %c0_17 = arith.constant 0 : index
    %c0_18 = arith.constant 0 : index
    %20 = vector.load %arg7[%c0_16, %c0_17, %c0_18] : memref<1x8x128xbf16, #tpu.memory_space<vmem>>, vector<1x8x128xbf16>
    %21 = vector.shape_cast %20 : vector<1x8x128xbf16> to vector<8x128xbf16>
    %c0_19 = arith.constant 0 : index
    %c0_20 = arith.constant 0 : index
    %c0_21 = arith.constant 0 : index
    %22 = vector.load %arg8[%c0_19, %c0_20, %c0_21] : memref<1x8x1xf32, #tpu.memory_space<vmem>>, vector<1x8x1xf32>
    %23 = vector.shape_cast %22 : vector<1x8x1xf32> to vector<8x1xf32>
    %24 = arith.truncf %19 : vector<128x128xf32> to vector<128x128xbf16>
    %cst_22 = arith.constant dense<0.000000e+00> : vector<8x128xf32>
    %25 = tpu.matmul %21, %24, %cst_22 {dimension_numbers = #tpu.dot_dimension_numbers<[1], [0], [0], [1], [0, 0, 1, 1], [], []>} : vector<8x128xbf16>, vector<128x128xbf16>, vector<8x128xf32> -> vector<8x128xf32>
    %26 = vector.broadcast %23 : vector<8x1xf32> to vector<8x128xf32>
    %27 = arith.addf %25, %26 : vector<8x128xf32>
    %c0_23 = arith.constant 0 : index
    %c0_24 = arith.constant 0 : index
    %28 = vector.load %arg9[%c0_23, %c0_24] : memref<8x128xf32, #tpu.memory_space<vmem>>, vector<8x128xf32>
    tpu.vector_store %arg9[%c0_23, %c0_24], %27 {strides = array<i32>} : memref<8x128xf32, #tpu.memory_space<vmem>>, vector<8x128xf32>,
    return
  }
  func.func @transform_0(%arg0: i32, %arg1: memref<2xi32, #tpu.memory_space<smem>>) -> (i32, i32) {
    %c0_i32 = arith.constant 0 : i32
    %c0_i32_0 = arith.constant 0 : i32
    return %c0_i32, %arg0 : i32, i32
  }
  func.func @transform_1(%arg0: i32, %arg1: memref<2xi32, #tpu.memory_space<smem>>) -> (i32, i32, i32) {
    %0 = arith.index_cast %arg0 : i32 to index
    %1 = memref.load %arg1[%0] : memref<2xi32, #tpu.memory_space<smem>>
    %c0_i32 = arith.constant 0 : i32
    %c0_i32_0 = arith.constant 0 : i32
    %c0_i32_1 = arith.constant 0 : i32
    return %1, %c0_i32, %c0_i32_0 : i32, i32, i32
  }
  func.func @transform_2(%arg0: i32, %arg1: memref<2xi32, #tpu.memory_space<smem>>) -> (i32, i32, i32) {
    %0 = arith.index_cast %arg0 : i32 to index
    %1 = memref.load %arg1[%0] : memref<2xi32, #tpu.memory_space<smem>>
    %c0_i32 = arith.constant 0 : i32
    %c0_i32_0 = arith.constant 0 : i32
    %c0_i32_1 = arith.constant 0 : i32
    return %1, %c0_i32, %c0_i32_0 : i32, i32, i32
  }
  func.func @transform_3(%arg0: i32, %arg1: memref<2xi32, #tpu.memory_space<smem>>) -> (i32, i32, i32) {
    %0 = arith.index_cast %arg0 : i32 to index
    %1 = memref.load %arg1[%0] : memref<2xi32, #tpu.memory_space<smem>>
    %c0_i32 = arith.constant 0 : i32
    %c0_i32_0 = arith.constant 0 : i32
    %c0_i32_1 = arith.constant 0 : i32
    return %1, %c0_i32, %c0_i32_0 : i32, i32, i32
  }
  func.func @transform_4(%arg0: i32, %arg1: memref<2xi32, #tpu.memory_space<smem>>) -> (i32, i32, i32) {
    %0 = arith.index_cast %arg0 : i32 to index
    %1 = memref.load %arg1[%0] : memref<2xi32, #tpu.memory_space<smem>>
    %c0_i32 = arith.constant 0 : i32
    %c0_i32_0 = arith.constant 0 : i32
    %c0_i32_1 = arith.constant 0 : i32
    return %1, %c0_i32, %c0_i32_0 : i32, i32, i32
  }
  func.func @transform_5(%arg0: i32, %arg1: memref<2xi32, #tpu.memory_space<smem>>) -> (i32, i32, i32) {
    %0 = arith.index_cast %arg0 : i32 to index
    %1 = memref.load %arg1[%0] : memref<2xi32, #tpu.memory_space<smem>>
    %c0_i32 = arith.constant 0 : i32
    %c0_i32_0 = arith.constant 0 : i32
    %c0_i32_1 = arith.constant 0 : i32
    return %1, %c0_i32, %c0_i32_0 : i32, i32, i32
  }
  func.func @transform_6(%arg0: i32, %arg1: memref<2xi32, #tpu.memory_space<smem>>) -> (i32, i32, i32) {
    %0 = arith.index_cast %arg0 : i32 to index
    %1 = memref.load %arg1[%0] : memref<2xi32, #tpu.memory_space<smem>>
    %c0_i32 = arith.constant 0 : i32
    %c0_i32_0 = arith.constant 0 : i32
    %c0_i32_1 = arith.constant 0 : i32
    return %1, %c0_i32, %c0_i32_0 : i32, i32, i32
  }
  func.func @transform_7(%arg0: i32, %arg1: memref<2xi32, #tpu.memory_space<smem>>) -> (i32, i32) {
    %c0_i32 = arith.constant 0 : i32
    %c0_i32_0 = arith.constant 0 : i32
    return %c0_i32, %arg0 : i32, i32
  }
}

</mosaic_0001>

<llo_original>
// kernel: tpu_custom_call.1
$region0: #{tpu_custom_call.1}
  #allocation0 [shape = 'u32[]', space=smem, size = 0x4, offset = 0x4, fixed_abs, tag = 'smem constant byte address 0x4 - core index']
  #allocation1 [shape = 'u32[144,128]{1,0:T(1,128)}', space=vmem, size = 0x12000, scoped, tag = 'internal scratch']
  #allocation2 [shape = 's32[1]{0}', space=sflag, size = 0x4, scoped, tag = 'scoped memory for tpu_custom_call.1']
  #allocation3 [shape = 'u8[512]{0}', space=smem, size = 0x200, scoped, tag = 'prefetched SMEM operand 0']
  %s0 = inlined_call_operand.vmem [shape: s32[2], index: 0, kind: input, shape index: {}]
  %s1 = inlined_call_operand.vmem [shape: bf16[16,256], index: 1, kind: input, shape index: {}]
  %s2 = inlined_call_operand.vmem [shape: bf16[2,128,16], index: 2, kind: input, shape index: {}]
  %s3 = inlined_call_operand.vmem [shape: f32[2,128,1], index: 3, kind: input, shape index: {}]
  %s4 = inlined_call_operand.vmem [shape: bf16[2,128,128], index: 4, kind: input, shape index: {}]
  %s5 = inlined_call_operand.vmem [shape: f32[2,128,1], index: 5, kind: input, shape index: {}]
  %s6 = inlined_call_operand.vmem [shape: bf16[2,8,128], index: 6, kind: input, shape index: {}]
  %s7 = inlined_call_operand.vmem [shape: f32[2,8,1], index: 7, kind: input, shape index: {}]
  %s8 = inlined_call_operand.hbm [shape: f32[8,256], index: 8, kind: output, shape index: {}]
  %s9 = sld [smem:[#allocation0]]
  $region102: #{tpu_custom_call.1} parent=0
    _
  %s11 = ssub.s32 1, %s9
  %s12 = scalar_select 0, %s11, %s9
  %s13 = sshll.u32 %s0, 4
  %s14 = int_to_ptr.vmem [resolvable:$true] %s13
  %16 = dma.vmem_to_smem %s14, 16, [#allocation3], [#allocation2]
  %17 = dma.done [#allocation2], 16
  %18 = sfence
  $region1: #{tpu_custom_call.1} parent=0
    #allocation4 [shape = 'u8[8192]{0}', space=vmem, size = 0x2000, scoped, tag = 'input window, operand 1']
    #allocation5 [shape = 'u8[8192]{0}', space=vmem, size = 0x2000, scoped, tag = 'output window, operand 0']
    #allocation6 [shape = 's32[2]{0}', space=sflag, size = 0x8, scoped, tag = 'scoped memory for tpu_custom_call.1']
    %19 = vsyncpa [#allocation6], 0
    %s20 = scalar_lea.sflag [#allocation6], 1
    %21 = vsyncpa %s20, 0
    loop: start=0, step=1, limit=4
    $region2: #{tpu_custom_call.1} parent=1 // loop_pre_header
      _
    $region3: #{tpu_custom_call.1} parent=1 // loop_header
      %s23 = sphi 0, %s27
      %p24 = scmp.ge.s32.totalorder %s23, 4
      %s33 = sphi 0, %s35
      %s36 = sphi 0, %s33
      %s37 = sphi 0, %s36
      %s53 = sphi 0, %s37
      %s61 = sphi 0, %s63
      %s64 = sphi 0, %s61
      %s65 = sphi 0, %s64
      %s81 = sphi 0, %s65
      %s89 = sphi 0, %s91
      %s92 = sphi 0, %s89
      %s93 = sphi 0, %s92
      %s109 = sphi 0, %s93
      %s117 = sphi 0, %s119
      %s120 = sphi 0, %s117
      %s121 = sphi 0, %s120
      %s137 = sphi 0, %s121
      %s145 = sphi 0, %s147
      %s148 = sphi 0, %s145
      %s149 = sphi 0, %s148
      %s165 = sphi 0, %s149
      %s173 = sphi 0, %s175
      %s176 = sphi 0, %s173
      %s177 = sphi 0, %s176
      %s193 = sphi 0, %s177
      %s201 = sphi 0, %s203
      %s204 = sphi 0, %s201
      %s205 = sphi 0, %s204
      %s221 = sphi 0, %s205
      %s227 = sphi 0, %s229
      %s230 = sphi 0, %s227
      %s231 = sphi 0, %s230
      %s247 = sphi 0, %s231
    $region4: #{tpu_custom_call.1} parent=1 // loop_header_branch
      %26 = sbr.rel (%p24) target = $region8
    $region5: #{tpu_custom_call.1} parent=1 // loop_body
      %s28 = ssub.s32 %s23, 1
      %s29 = ssub.s32 %s23, 2
      %s30 = sadd.s32 %s23, 1
      %s31 = ssub.s32 %s23, %s30
      %p32 = scmp.eq.s32.totalorder %s31, 0
      %s34 = sadd.s32 %s33, 1
      %s35 = scalar_select %p32, %s33, %s34
      %p38 = pneg %p32
      %p39 = scmp.eq.s32.totalorder %s23, 1
      %p40 = por %p38, %p39
      %p41 = scmp.ne.s32.totalorder %s33, %s36
      %p42 = scmp.eq.s32.totalorder %s23, 0
      %p43 = por %p41, %p42
      %p44 = scmp.ne.s32.totalorder %s33, %s36
      %p45 = scmp.eq.s32.totalorder %s28, 1
      %p46 = por %p44, %p45
      %p47 = scmp.ne.s32.totalorder %s36, %s37
      %p48 = scmp.eq.s32.totalorder %s28, 0
      %p49 = por %p47, %p48
      %p50 = scmp.ne.s32.totalorder %s36, %s37
      %p51 = scmp.eq.s32.totalorder %s29, 1
      %p52 = por %p50, %p51
      %p54 = scmp.ne.s32.totalorder %s37, %s53
      %p55 = scmp.eq.s32.totalorder %s29, 0
      %p56 = por %p54, %p55
      %s57 = sld [smem:[#allocation3 + %s23]]
      %s58 = sld [smem:[#allocation3 + %s30]]
      %s59 = ssub.s32 %s57, %s58
      %p60 = scmp.eq.s32.totalorder %s59, 0
      %s62 = sadd.s32 %s61, 1
      %s63 = scalar_select %p60, %s61, %s62
      %p66 = pneg %p60
      %p67 = scmp.eq.s32.totalorder %s23, 1
      %p68 = por %p66, %p67
      %p69 = scmp.ne.s32.totalorder %s61, %s64
      %p70 = scmp.eq.s32.totalorder %s23, 0
      %p71 = por %p69, %p70
      %p72 = scmp.ne.s32.totalorder %s61, %s64
      %p73 = scmp.eq.s32.totalorder %s28, 1
      %p74 = por %p72, %p73
      %p75 = scmp.ne.s32.totalorder %s64, %s65
      %p76 = scmp.eq.s32.totalorder %s28, 0
      %p77 = por %p75, %p76
      %p78 = scmp.ne.s32.totalorder %s64, %s65
      %p79 = scmp.eq.s32.totalorder %s29, 1
      %p80 = por %p78, %p79
      %p82 = scmp.ne.s32.totalorder %s65, %s81
      %p83 = scmp.eq.s32.totalorder %s29, 0
      %p84 = por %p82, %p83
      %s85 = sld [smem:[#allocation3 + %s23]]
      %s86 = sld [smem:[#allocation3 + %s30]]
      %s87 = ssub.s32 %s85, %s86
      %p88 = scmp.eq.s32.totalorder %s87, 0
      %s90 = sadd.s32 %s89, 1
      %s91 = scalar_select %p88, %s89, %s90
      %p94 = pneg %p88
      %p95 = scmp.eq.s32.totalorder %s23, 1
      %p96 = por %p94, %p95
      %p97 = scmp.ne.s32.totalorder %s89, %s92
      %p98 = scmp.eq.s32.totalorder %s23, 0
      %p99 = por %p97, %p98
      %p100 = scmp.ne.s32.totalorder %s89, %s92
      %p101 = scmp.eq.s32.totalorder %s28, 1
      %p102 = por %p100, %p101
      %p103 = scmp.ne.s32.totalorder %s92, %s93
      %p104 = scmp.eq.s32.totalorder %s28, 0
      %p105 = por %p103, %p104
      %p106 = scmp.ne.s32.totalorder %s92, %s93
      %p107 = scmp.eq.s32.totalorder %s29, 1
      %p108 = por %p106, %p107
      %p110 = scmp.ne.s32.totalorder %s93, %s109
      %p111 = scmp.eq.s32.totalorder %s29, 0
      %p112 = por %p110, %p111
      %s113 = sld [smem:[#allocation3 + %s23]]
      %s114 = sld [smem:[#allocation3 + %s30]]
      %s115 = ssub.s32 %s113, %s114
      %p116 = scmp.eq.s32.totalorder %s115, 0
      %s118 = sadd.s32 %s117, 1
      %s119 = scalar_select %p116, %s117, %s118
      %p122 = pneg %p116
      %p123 = scmp.eq.s32.totalorder %s23, 1
      %p124 = por %p122, %p123
      %p125 = scmp.ne.s32.totalorder %s117, %s120
      %p126 = scmp.eq.s32.totalorder %s23, 0
      %p127 = por %p125, %p126
      %p128 = scmp.ne.s32.totalorder %s117, %s120
      %p129 = scmp.eq.s32.totalorder %s28, 1
      %p130 = por %p128, %p129
      %p131 = scmp.ne.s32.totalorder %s120, %s121
      %p132 = scmp.eq.s32.totalorder %s28, 0
      %p133 = por %p131, %p132
      %p134 = scmp.ne.s32.totalorder %s120, %s121
      %p135 = scmp.eq.s32.totalorder %s29, 1
      %p136 = por %p134, %p135
      %p138 = scmp.ne.s32.totalorder %s121, %s137
      %p139 = scmp.eq.s32.totalorder %s29, 0
      %p140 = por %p138, %p139
      %s141 = sld [smem:[#allocation3 + %s23]]
      %s142 = sld [smem:[#allocation3 + %s30]]
      %s143 = ssub.s32 %s141, %s142
      %p144 = scmp.eq.s32.totalorder %s143, 0
      %s146 = sadd.s32 %s145, 1
      %s147 = scalar_select %p144, %s145, %s146
      %p150 = pneg %p144
      %p151 = scmp.eq.s32.totalorder %s23, 1
      %p152 = por %p150, %p151
      %p153 = scmp.ne.s32.totalorder %s145, %s148
      %p154 = scmp.eq.s32.totalorder %s23, 0
      %p155 = por %p153, %p154
      %p156 = scmp.ne.s32.totalorder %s145, %s148
      %p157 = scmp.eq.s32.totalorder %s28, 1
      %p158 = por %p156, %p157
      %p159 = scmp.ne.s32.totalorder %s148, %s149
      %p160 = scmp.eq.s32.totalorder %s28, 0
      %p161 = por %p159, %p160
      %p162 = scmp.ne.s32.totalorder %s148, %s149
      %p163 = scmp.eq.s32.totalorder %s29, 1
      %p164 = por %p162, %p163
      %p166 = scmp.ne.s32.totalorder %s149, %s165
      %p167 = scmp.eq.s32.totalorder %s29, 0
      %p168 = por %p166, %p167
      %s169 = sld [smem:[#allocation3 + %s23]]
      %s170 = sld [smem:[#allocation3 + %s30]]
      %s171 = ssub.s32 %s169, %s170
      %p172 = scmp.eq.s32.totalorder %s171, 0
      %s174 = sadd.s32 %s173, 1
      %s175 = scalar_select %p172, %s173, %s174
      %p178 = pneg %p172
      %p179 = scmp.eq.s32.totalorder %s23, 1
      %p180 = por %p178, %p179
      %p181 = scmp.ne.s32.totalorder %s173, %s176
      %p182 = scmp.eq.s32.totalorder %s23, 0
      %p183 = por %p181, %p182
      %p184 = scmp.ne.s32.totalorder %s173, %s176
      %p185 = scmp.eq.s32.totalorder %s28, 1
      %p186 = por %p184, %p185
      %p187 = scmp.ne.s32.totalorder %s176, %s177
      %p188 = scmp.eq.s32.totalorder %s28, 0
      %p189 = por %p187, %p188
      %p190 = scmp.ne.s32.totalorder %s176, %s177
      %p191 = scmp.eq.s32.totalorder %s29, 1
      %p192 = por %p190, %p191
      %p194 = scmp.ne.s32.totalorder %s177, %s193
      %p195 = scmp.eq.s32.totalorder %s29, 0
      %p196 = por %p194, %p195
      %s197 = sld [smem:[#allocation3 + %s23]]
      %s198 = sld [smem:[#allocation3 + %s30]]
      %s199 = ssub.s32 %s197, %s198
      %p200 = scmp.eq.s32.totalorder %s199, 0
      %s202 = sadd.s32 %s201, 1
      %s203 = scalar_select %p200, %s201, %s202
      %p206 = pneg %p200
      %p207 = scmp.eq.s32.totalorder %s23, 1
      %p208 = por %p206, %p207
      %p209 = scmp.ne.s32.totalorder %s201, %s204
      %p210 = scmp.eq.s32.totalorder %s23, 0
      %p211 = por %p209, %p210
      %p212 = scmp.ne.s32.totalorder %s201, %s204
      %p213 = scmp.eq.s32.totalorder %s28, 1
      %p214 = por %p212, %p213
      %p215 = scmp.ne.s32.totalorder %s204, %s205
      %p216 = scmp.eq.s32.totalorder %s28, 0
      %p217 = por %p215, %p216
      %p218 = scmp.ne.s32.totalorder %s204, %s205
      %p219 = scmp.eq.s32.totalorder %s29, 1
      %p220 = por %p218, %p219
      %p222 = scmp.ne.s32.totalorder %s205, %s221
      %p223 = scmp.eq.s32.totalorder %s29, 0
      %p224 = por %p222, %p223
      %s225 = ssub.s32 %s23, %s30
      %p226 = scmp.eq.s32.totalorder %s225, 0
      %s228 = sadd.s32 %s227, 1
      %s229 = scalar_select %p226, %s227, %s228
      %p232 = pneg %p226
      %p233 = scmp.eq.s32.totalorder %s23, 1
      %p234 = por %p232, %p233
      %p235 = scmp.ne.s32.totalorder %s227, %s230
      %p236 = scmp.eq.s32.totalorder %s23, 0
      %p237 = por %p235, %p236
      %p238 = scmp.ne.s32.totalorder %s227, %s230
      %p239 = scmp.eq.s32.totalorder %s28, 1
      %p240 = por %p238, %p239
      %p241 = scmp.ne.s32.totalorder %s230, %s231
      %p242 = scmp.eq.s32.totalorder %s28, 0
      %p243 = por %p241, %p242
      %p244 = scmp.ne.s32.totalorder %s230, %s231
      %p245 = scmp.eq.s32.totalorder %s29, 1
      %p246 = por %p244, %p245
      %p248 = scmp.ne.s32.totalorder %s231, %s247
      %p249 = scmp.eq.s32.totalorder %s29, 0
      %p250 = por %p248, %p249
      %p251 = scmp.le.s32.totalorder 1, %s23
      %p252 = scmp.lt.s32.totalorder %s23, 3
      %p253 = pnand %p251, %p252
      %p254 = pneg %p253
      // Predicated region
      $region9: #{tpu_custom_call.1} parent=5 // pred_check
        _
      $region10: #{tpu_custom_call.1} parent=5 // pred_check_branch
        %256 = sbr.rel (%p253) target = $region12
      $region11: #{tpu_custom_call.1} parent=5 // pred_region
        %s257 = ssub.s32 %s23, 1
      $region12: #{tpu_custom_call.1} parent=5 // pred_fallthru
        _
      %p258 = scmp.lt.s32.totalorder %s23, 2
      // Predicated region
      $region13: #{tpu_custom_call.1} parent=5 // pred_check
        %p259 = pneg %p258
      $region14: #{tpu_custom_call.1} parent=5 // pred_check_branch
        %261 = sbr.rel (%p259) target = $region16
      $region15: #{tpu_custom_call.1} parent=5 // pred_region
        // Predicated region
        $region17: #{tpu_custom_call.1} parent=15 // pred_check
          %p262 = pneg %p43
        $region18: #{tpu_custom_call.1} parent=15 // pred_check_branch
          %264 = sbr.rel (%p262) target = $region20
        $region19: #{tpu_custom_call.1} parent=15 // pred_region
          %s265 = sand.u32 %s33, 1
          %s266 = sand.u32 %s33, 1
          %s267 = smul.addr %s266, 8
          %s268 = scalar_lea.vmem [#allocation4], %s267
          %s269 = smul.addr %s23, 4
          %s270 = scalar_lea.vmem %s1, %s269
          // Predicated region
          $region21: #{tpu_custom_call.1} parent=19 // pred_check
            _
          $region22: #{tpu_custom_call.1} parent=19 // pred_check_branch
            %272 = sbr.rel (0) target = $region24
          $region23: #{tpu_custom_call.1} parent=19 // pred_region
            // Predicated region
            $region25: #{tpu_custom_call.1} parent=23 // pred_check
              _
            $region26: #{tpu_custom_call.1} parent=23 // pred_check_branch
              %274 = sbr.rel target = $region28
            $region27: #{tpu_custom_call.1} parent=23 // pred_region
              // Predicated region
              $region40: #{tpu_custom_call.1} parent=27 // pred_check
                _
              $region41: #{tpu_custom_call.1} parent=27 // pred_check_branch
                %292 = sbr.rel (0) target = $region43
              $region42: #{tpu_custom_call.1} parent=27 // pred_region
                loop: start=0, step=1, limit=1
                $region44: #{tpu_custom_call.1} parent=42 // loop_pre_header
                  _
                $region45: #{tpu_custom_call.1} parent=42 // loop_header
                  %s294 = sphi 0, %s298
                  %p295 = scmp.ge.s32.totalorder %s294, 1
                  %s299 = sphi %s270, %s270
                  %s300 = sphi %s268, %s268
                $region46: #{tpu_custom_call.1} parent=42 // loop_header_branch
                  %297 = sbr.rel (%p295) target = $region50
                $region47: #{tpu_custom_call.1} parent=42 // loop_body
                  _
                $region48: #{tpu_custom_call.1} parent=42 // loop_footer
                  %s298 = sadd.s32 1, %s294
                $region49: #{tpu_custom_call.1} parent=42 // loop_footer_branch
                  %293 = sbr.rel target = $region45
                $region50: #{tpu_custom_call.1} parent=42 // loop_exit
                  _
                %s302 = ssub.s32 16, 1
                loop: start=0, step=1, limit=1
                $region51: #{tpu_custom_call.1} parent=42 // loop_pre_header
                  _
                $region52: #{tpu_custom_call.1} parent=42 // loop_header
                  %s304 = sphi 0, %s308
                  %p305 = scmp.ge.s32.totalorder %s304, 1
                  %s309 = sphi %s270, %s270
                  %s310 = sphi %s268, %s268
                $region53: #{tpu_custom_call.1} parent=42 // loop_header_branch
                  %307 = sbr.rel (%p305) target = $region57
                $region54: #{tpu_custom_call.1} parent=42 // loop_body
                  %v311 = vld [vmem:[%s309] sm:%s302]
                  %312 = vst [vmem:[%s310] sm:%s302] %v311
                  %v313 = vld [vmem:[%s309 + $0x8] sm:%s302]
                  %314 = vst [vmem:[%s310 + $0x4] sm:%s302] %v313
                $region55: #{tpu_custom_call.1} parent=42 // loop_footer
                  %s308 = sadd.s32 1, %s304
                $region56: #{tpu_custom_call.1} parent=42 // loop_footer_branch
                  %303 = sbr.rel target = $region52
                $region57: #{tpu_custom_call.1} parent=42 // loop_exit
                  _
              $region43: #{tpu_custom_call.1} parent=27 // pred_fallthru
                _
            $region28: #{tpu_custom_call.1} parent=23 // pred_fallthru
              _
            // Predicated region
            $region29: #{tpu_custom_call.1} parent=23 // pred_check
              _
            $region30: #{tpu_custom_call.1} parent=23 // pred_check_branch
              %276 = sbr.rel (0) target = $region32
            $region31: #{tpu_custom_call.1} parent=23 // pred_region
              %s278 = ssub.s32 16, 1
              loop: start=0, step=1, limit=1
              $region33: #{tpu_custom_call.1} parent=31 // loop_pre_header
                _
              $region34: #{tpu_custom_call.1} parent=31 // loop_header
                %s280 = sphi 0, %s284
                %p281 = scmp.ge.s32.totalorder %s280, 1
                %s285 = sphi %s270, %s270
                %s286 = sphi %s268, %s268
              $region35: #{tpu_custom_call.1} parent=31 // loop_header_branch
                %283 = sbr.rel (%p281) target = $region39
              $region36: #{tpu_custom_call.1} parent=31 // loop_body
                %v287 = vld [vmem:[%s285] sm:%s278]
                %288 = vst [vmem:[%s286] sm:%s278] %v287
                %v289 = vld [vmem:[%s285 + $0x8] sm:%s278]
                %290 = vst [vmem:[%s286 + $0x4] sm:%s278] %v289
              $region37: #{tpu_custom_call.1} parent=31 // loop_footer
                %s284 = sadd.s32 1, %s280
              $region38: #{tpu_custom_call.1} parent=31 // loop_footer_branch
                %279 = sbr.rel target = $region34
              $region39: #{tpu_custom_call.1} parent=31 // loop_exit
                _
            $region32: #{tpu_custom_call.1} parent=23 // pred_fallthru
              _
          $region24: #{tpu_custom_call.1} parent=19 // pred_fallthru
            _
          %315 = vnop
        $region20: #{tpu_custom_call.1} parent=15 // pred_fallthru
          _
        // Predicated region
        $region58: #{tpu_custom_call.1} parent=15 // pred_check
          %p316 = pneg %p71
        $region59: #{tpu_custom_call.1} parent=15 // pred_check_branch
          %318 = sbr.rel (%p316) target = $region61
        $region60: #{tpu_custom_call.1} parent=15 // pred_region
          %s319 = sld [smem:[#allocation3 + %s23]]
          %p320 = scmp.lt.s32.totalorder %s319, 1
          %s321 = scalar_select %p320, %s319, 1
          %s322 = smul.addr %s321, 16
          %s323 = smul.addr %s322, 4
          %s324 = scalar_lea.vmem %s2, %s323
          %s325 = sld [smem:[#allocation3 + %s23]]
        $region61: #{tpu_custom_call.1} parent=15 // pred_fallthru
          _
        // Predicated region
        $region62: #{tpu_custom_call.1} parent=15 // pred_check
          %p326 = pneg %p99
        $region63: #{tpu_custom_call.1} parent=15 // pred_check_branch
          %328 = sbr.rel (%p326) target = $region65
        $region64: #{tpu_custom_call.1} parent=15 // pred_region
          %s329 = sld [smem:[#allocation3 + %s23]]
          %p330 = scmp.lt.s32.totalorder %s329, 1
          %s331 = scalar_select %p330, %s329, 1
          %s332 = smul.addr %s331, 16
          %s333 = smul.addr %s332, 8
          %s334 = scalar_lea.vmem %s3, %s333
          %s335 = sld [smem:[#allocation3 + %s23]]
        $region65: #{tpu_custom_call.1} parent=15 // pred_fallthru
          _
        // Predicated region
        $region66: #{tpu_custom_call.1} parent=15 // pred_check
          %p336 = pneg %p127
        $region67: #{tpu_custom_call.1} parent=15 // pred_check_branch
          %338 = sbr.rel (%p336) target = $region69
        $region68: #{tpu_custom_call.1} parent=15 // pred_region
          %s339 = sld [smem:[#allocation3 + %s23]]
          %p340 = scmp.lt.s32.totalorder %s339, 1
          %s341 = scalar_select %p340, %s339, 1
          %s342 = smul.addr %s341, 16
          %s343 = smul.addr %s342, 4
          %s344 = scalar_lea.vmem %s4, %s343
          %s345 = sld [smem:[#allocation3 + %s23]]
        $region69: #{tpu_custom_call.1} parent=15 // pred_fallthru
          _
        // Predicated region
        $region70: #{tpu_custom_call.1} parent=15 // pred_check
          %p346 = pneg %p155
        $region71: #{tpu_custom_call.1} parent=15 // pred_check_branch
          %348 = sbr.rel (%p346) target = $region73
        $region72: #{tpu_custom_call.1} parent=15 // pred_region
          %s349 = sld [smem:[#allocation3 + %s23]]
          %p350 = scmp.lt.s32.totalorder %s349, 1
          %s351 = scalar_select %p350, %s349, 1
          %s352 = smul.addr %s351, 16
          %s353 = smul.addr %s352, 8
          %s354 = scalar_lea.vmem %s5, %s353
          %s355 = sld [smem:[#allocation3 + %s23]]
        $region73: #{tpu_custom_call.1} parent=15 // pred_fallthru
          _
        // Predicated region
        $region74: #{tpu_custom_call.1} parent=15 // pred_check
          %p356 = pneg %p183
        $region75: #{tpu_custom_call.1} parent=15 // pred_check_branch
          %358 = sbr.rel (%p356) target = $region77
        $region76: #{tpu_custom_call.1} parent=15 // pred_region
          %s359 = sld [smem:[#allocation3 + %s23]]
          %p360 = scmp.lt.s32.totalorder %s359, 1
          %s361 = scalar_select %p360, %s359, 1
          %s362 = smul.addr %s361, 4
          %s363 = scalar_lea.vmem %s6, %s362
          %s364 = sld [smem:[#allocation3 + %s23]]
        $region77: #{tpu_custom_call.1} parent=15 // pred_fallthru
          _
        // Predicated region
        $region78: #{tpu_custom_call.1} parent=15 // pred_check
          %p365 = pneg %p211
        $region79: #{tpu_custom_call.1} parent=15 // pred_check_branch
          %367 = sbr.rel (%p365) target = $region81
        $region80: #{tpu_custom_call.1} parent=15 // pred_region
          %s368 = sld [smem:[#allocation3 + %s23]]
          %p369 = scmp.lt.s32.totalorder %s368, 1
          %s370 = scalar_select %p369, %s368, 1
          %s371 = smul.addr %s370, 8
          %s372 = scalar_lea.vmem %s7, %s371
          %s373 = sld [smem:[#allocation3 + %s23]]
        $region81: #{tpu_custom_call.1} parent=15 // pred_fallthru
          _
      $region16: #{tpu_custom_call.1} parent=5 // pred_fallthru
        _
      %p374 = scmp.le.s32.totalorder 1, %s23
      %p375 = scmp.lt.s32.totalorder %s23, 3
      %p376 = pnand %p374, %p375
      %p377 = pneg %p376
      // Predicated region
      $region82: #{tpu_custom_call.1} parent=5 // pred_check
        _
      $region83: #{tpu_custom_call.1} parent=5 // pred_check_branch
        %379 = sbr.rel (%p376) target = $region85
      $region84: #{tpu_custom_call.1} parent=5 // pred_region
        %s380 = ssub.s32 %s23, 1
        %s381 = sand.u32 %s36, 1
        %s382 = sand.u32 %s36, 1
        %s383 = smul.addr %s382, 8
        %s384 = scalar_lea.vmem [#allocation4], %s383
        // Predicated region
        $region86: #{tpu_custom_call.1} parent=84 // pred_check
          %p385 = pneg %p49
        $region87: #{tpu_custom_call.1} parent=84 // pred_check_branch
          %387 = sbr.rel (%p385) target = $region89
        $region88: #{tpu_custom_call.1} parent=84 // pred_region
          _
        $region89: #{tpu_custom_call.1} parent=84 // pred_fallthru
          _
        %s388 = sand.u32 %s36, 1
        %s389 = sand.u32 %s36, 1
        %s390 = smul.addr %s389, 8
        %s391 = scalar_lea.vmem [#allocation4], %s390
        %p392 = pneg %p49
        %p393 = pneg %p46
        %s394 = sld [smem:[#allocation3 + %s28]]
        %p395 = scmp.lt.s32.totalorder %s394, 1
        %s396 = scalar_select %p395, %s394, 1
        %s397 = smul.addr %s396, 16
        %s398 = smul.addr %s397, 4
        %s399 = scalar_lea.vmem %s2, %s398
        %p400 = pneg %p77
        %p401 = pneg %p74
        %s402 = sld [smem:[#allocation3 + %s28]]
        %p403 = scmp.lt.s32.totalorder %s402, 1
        %s404 = scalar_select %p403, %s402, 1
        %s405 = smul.addr %s404, 16
        %s406 = smul.addr %s405, 8
        %s407 = scalar_lea.vmem %s3, %s406
        %p408 = pneg %p105
        %p409 = pneg %p102
        %s410 = sld [smem:[#allocation3 + %s28]]
        %p411 = scmp.lt.s32.totalorder %s410, 1
        %s412 = scalar_select %p411, %s410, 1
        %s413 = smul.addr %s412, 16
        %s414 = smul.addr %s413, 4
        %s415 = scalar_lea.vmem %s4, %s414
        %p416 = pneg %p133
        %p417 = pneg %p130
        %s418 = sld [smem:[#allocation3 + %s28]]
        %p419 = scmp.lt.s32.totalorder %s418, 1
        %s420 = scalar_select %p419, %s418, 1
        %s421 = smul.addr %s420, 16
        %s422 = smul.addr %s421, 8
        %s423 = scalar_lea.vmem %s5, %s422
        %p424 = pneg %p161
        %p425 = pneg %p158
        %s426 = sld [smem:[#allocation3 + %s28]]
        %p427 = scmp.lt.s32.totalorder %s426, 1
        %s428 = scalar_select %p427, %s426, 1
        %s429 = smul.addr %s428, 4
        %s430 = scalar_lea.vmem %s6, %s429
        %p431 = pneg %p189
        %p432 = pneg %p186
        %s433 = sld [smem:[#allocation3 + %s28]]
        %p434 = scmp.lt.s32.totalorder %s433, 1
        %s435 = scalar_select %p434, %s433, 1
        %s436 = smul.addr %s435, 8
        %s437 = scalar_lea.vmem %s7, %s436
        %p438 = pneg %p217
        %p439 = pneg %p214
        %p440 = pneg %p243
        %p441 = pneg %p240
        %s442 = sand.u32 %s230, 1
        %s443 = scalar_lea.sflag [#allocation6], %s442
        %s444 = sand.u32 %s230, 1
        %s445 = smul.addr %s444, 8
        %s446 = scalar_lea.vmem [#allocation5], %s445
        %s447 = sld [smem:[#allocation3 + %s28]]
        %p448 = scmp.lt.s32.totalorder %s447, 1
        %s449 = scalar_select %p448, %s447, 1
        %s450 = smul.addr %s449, 16
        %s451 = smul.addr %s450, 4
        %s452 = scalar_lea.vmem %s2, %s451
        %s453 = sld [smem:[#allocation3 + %s28]]
        %s454 = sld [smem:[#allocation3 + %s28]]
        %p455 = scmp.lt.s32.totalorder %s454, 1
        %s456 = scalar_select %p455, %s454, 1
        %s457 = smul.addr %s456, 16
        %s458 = smul.addr %s457, 8
        %s459 = scalar_lea.vmem %s3, %s458
        %s460 = sld [smem:[#allocation3 + %s28]]
        %s461 = sld [smem:[#allocation3 + %s28]]
        %p462 = scmp.lt.s32.totalorder %s461, 1
        %s463 = scalar_select %p462, %s461, 1
        %s464 = smul.addr %s463, 16
        %s465 = smul.addr %s464, 4
        %s466 = scalar_lea.vmem %s4, %s465
        %s467 = sld [smem:[#allocation3 + %s28]]
        %s468 = sld [smem:[#allocation3 + %s28]]
        %p469 = scmp.lt.s32.totalorder %s468, 1
        %s470 = scalar_select %p469, %s468, 1
        %s471 = smul.addr %s470, 16
        %s472 = smul.addr %s471, 8
        %s473 = scalar_lea.vmem %s5, %s472
        %s474 = sld [smem:[#allocation3 + %s28]]
        %s475 = sld [smem:[#allocation3 + %s28]]
        %p476 = scmp.lt.s32.totalorder %s475, 1
        %s477 = scalar_select %p476, %s475, 1
        %s478 = smul.addr %s477, 4
        %s479 = scalar_lea.vmem %s6, %s478
        %s480 = sld [smem:[#allocation3 + %s28]]
        %s481 = sld [smem:[#allocation3 + %s28]]
        %p482 = scmp.lt.s32.totalorder %s481, 1
        %s483 = scalar_select %p482, %s481, 1
        %s484 = smul.addr %s483, 8
        %s485 = scalar_lea.vmem %s7, %s484
        %s486 = sld [smem:[#allocation3 + %s28]]
        %v488 = vld [vmem:[%s384] sm:$0xf]
        %v489 = vld [vmem:[%s384 + $0x4] sm:$0xf]
        %v490 = vld [vmem:[%s452] sm:$0xf]
        %v491 = vld [vmem:[%s452 + $0x4] sm:$0xf]
        %v492 = vld [vmem:[%s452 + $0x8] sm:$0xf]
        %v493 = vld [vmem:[%s452 + $0xc] sm:$0xf]
        %v494 = vld [vmem:[%s452 + $0x10] sm:$0xf]
        %v495 = vld [vmem:[%s452 + $0x14] sm:$0xf]
        %v496 = vld [vmem:[%s452 + $0x18] sm:$0xf]
        %v497 = vld [vmem:[%s452 + $0x1c] sm:$0xf]
        %v498 = vld [vmem:[%s452 + $0x20] sm:$0xf]
        %v499 = vld [vmem:[%s452 + $0x24] sm:$0xf]
        %v500 = vld [vmem:[%s452 + $0x28] sm:$0xf]
        %v501 = vld [vmem:[%s452 + $0x2c] sm:$0xf]
        %v502 = vld [vmem:[%s452 + $0x30] sm:$0xf]
        %v503 = vld [vmem:[%s452 + $0x34] sm:$0xf]
        %v504 = vld [vmem:[%s452 + $0x38] sm:$0xf]
        %v505 = vld [vmem:[%s452 + $0x3c] sm:$0xf]
        %v506 = vld [vmem:[%s459] sm:$0xff]
        %v507 = vld [vmem:[%s459 + $0x8] sm:$0xff]
        %v508 = vld [vmem:[%s459 + $0x10] sm:$0xff]
        %v509 = vld [vmem:[%s459 + $0x18] sm:$0xff]
        %v510 = vld [vmem:[%s459 + $0x20] sm:$0xff]
        %v511 = vld [vmem:[%s459 + $0x28] sm:$0xff]
        %v512 = vld [vmem:[%s459 + $0x30] sm:$0xff]
        %v513 = vld [vmem:[%s459 + $0x38] sm:$0xff]
        %v514 = vld [vmem:[%s459 + $0x40] sm:$0xff]
        %v515 = vld [vmem:[%s459 + $0x48] sm:$0xff]
        %v516 = vld [vmem:[%s459 + $0x50] sm:$0xff]
        %v517 = vld [vmem:[%s459 + $0x58] sm:$0xff]
        %v518 = vld [vmem:[%s459 + $0x60] sm:$0xff]
        %v519 = vld [vmem:[%s459 + $0x68] sm:$0xff]
        %v520 = vld [vmem:[%s459 + $0x70] sm:$0xff]
        %v521 = vld [vmem:[%s459 + $0x78] sm:$0xff]
        %523 = vset.pattern.permute.xlu0 0
        %524 = vperm.xlu0 %523, %v506
        %v525 = vpop.permute.xlu0 %524
        %528 = vset.pattern.permute.xlu0 0
        %529 = vperm.xlu0 %528, %v507
        %v530 = vpop.permute.xlu0 %529
        %533 = vset.pattern.permute.xlu0 0
        %534 = vperm.xlu0 %533, %v508
        %v535 = vpop.permute.xlu0 %534
        %538 = vset.pattern.permute.xlu0 0
        %539 = vperm.xlu0 %538, %v509
        %v540 = vpop.permute.xlu0 %539
        %543 = vset.pattern.permute.xlu0 0
        %544 = vperm.xlu0 %543, %v510
        %v545 = vpop.permute.xlu0 %544
        %548 = vset.pattern.permute.xlu0 0
        %549 = vperm.xlu0 %548, %v511
        %v550 = vpop.permute.xlu0 %549
        %553 = vset.pattern.permute.xlu0 0
        %554 = vperm.xlu0 %553, %v512
        %v555 = vpop.permute.xlu0 %554
        %558 = vset.pattern.permute.xlu0 0
        %559 = vperm.xlu0 %558, %v513
        %v560 = vpop.permute.xlu0 %559
        %563 = vset.pattern.permute.xlu0 0
        %564 = vperm.xlu0 %563, %v514
        %v565 = vpop.permute.xlu0 %564
        %568 = vset.pattern.permute.xlu0 0
        %569 = vperm.xlu0 %568, %v515
        %v570 = vpop.permute.xlu0 %569
        %573 = vset.pattern.permute.xlu0 0
        %574 = vperm.xlu0 %573, %v516
        %v575 = vpop.permute.xlu0 %574
        %578 = vset.pattern.permute.xlu0 0
        %579 = vperm.xlu0 %578, %v517
        %v580 = vpop.permute.xlu0 %579
        %583 = vset.pattern.permute.xlu0 0
        %584 = vperm.xlu0 %583, %v518
        %v585 = vpop.permute.xlu0 %584
        %588 = vset.pattern.permute.xlu0 0
        %589 = vperm.xlu0 %588, %v519
        %v590 = vpop.permute.xlu0 %589
        %593 = vset.pattern.permute.xlu0 0
        %594 = vperm.xlu0 %593, %v520
        %v595 = vpop.permute.xlu0 %594
        %598 = vset.pattern.permute.xlu0 0
        %599 = vperm.xlu0 %598, %v521
        %v600 = vpop.permute.xlu0 %599
        %v618 = vunpack.c.l.b16 %v490
        %v619 = vunpack.c.l.b16 %v491
        %v620 = vunpack.c.l.b16 %v492
        %v621 = vunpack.c.l.b16 %v493
        %v622 = vunpack.c.l.b16 %v494
        %v623 = vunpack.c.l.b16 %v495
        %v624 = vunpack.c.l.b16 %v496
        %v625 = vunpack.c.l.b16 %v497
        %v626 = vunpack.c.l.b16 %v498
        %v627 = vunpack.c.l.b16 %v499
        %v628 = vunpack.c.l.b16 %v500
        %v629 = vunpack.c.l.b16 %v501
        %v630 = vunpack.c.l.b16 %v502
        %v631 = vunpack.c.l.b16 %v503
        %v632 = vunpack.c.l.b16 %v504
        %v633 = vunpack.c.l.b16 %v505
        %v634 = vpack.c.b16 %v619, %v618
        %v635 = vpack.c.b16 %v621, %v620
        %v636 = vpack.c.b16 %v623, %v622
        %v637 = vpack.c.b16 %v625, %v624
        %v638 = vpack.c.b16 %v627, %v626
        %v639 = vpack.c.b16 %v629, %v628
        %v640 = vpack.c.b16 %v631, %v630
        %v641 = vpack.c.b16 %v633, %v632
        %v644 = vunpack.c.l.b16 %v488
        %v645 = vunpack.c.l.b16 %v489
        %v646 = vpack.c.b16 %v645, %v644
        %vm648 = vcmask 130048
        %v650 = vsel %vm648, %v634, 0
        %v653 = vsel %vm648, %v635, 0
        %v656 = vsel %vm648, %v636, 0
        %v659 = vsel %vm648, %v637, 0
        %v662 = vsel %vm648, %v638, 0
        %v665 = vsel %vm648, %v639, 0
        %v668 = vsel %vm648, %v640, 0
        %v671 = vsel %vm648, %v641, 0
        %673 = vmatprep.subr.bf16.mxu0 0
        %674 = vmatpush1.bf16.msra.mxu0 0
        %675 = vmatprep.subr.bf16.mxu0 0
        %676 = vmatpush1.bf16.msra.mxu0 0
        %677 = vmatprep.subr.bf16.mxu0 0
        %678 = vmatpush1.bf16.msra.mxu0 0
        %679 = vmatprep.subr.bf16.mxu0 0
        %680 = vmatpush1.bf16.msra.mxu0 0
        %681 = vmatprep.subr.bf16.mxu0 0
        %682 = vmatpush1.bf16.msra.mxu0 0
        %683 = vmatprep.subr.bf16.mxu0 0
        %684 = vmatpush1.bf16.msra.mxu0 0
        %685 = vmatprep.subr.bf16.mxu0 0
        %686 = vmatpush1.bf16.msra.mxu0 0
        %687 = vmatprep.subr.bf16.mxu0 0
        %688 = vmatpush1.bf16.msra.mxu0 %v646
        %689 = vmatprep.subr.bf16.mxu0 0
        %690 = vmatpush2.bf16.msra.mxu0 0
        %691 = vmatprep.subr.bf16.mxu0 0
        %692 = vmatpush2.bf16.msra.mxu0 0
        %693 = vmatprep.subr.bf16.mxu0 0
        %694 = vmatpush2.bf16.msra.mxu0 0
        %695 = vmatprep.subr.bf16.mxu0 0
        %696 = vmatpush2.bf16.msra.mxu0 0
        %697 = vmatprep.subr.bf16.mxu0 0
        %698 = vmatpush2.bf16.msra.mxu0 0
        %699 = vmatprep.subr.bf16.mxu0 0
        %700 = vmatpush2.bf16.msra.mxu0 0
        %701 = vmatprep.subr.bf16.mxu0 0
        %702 = vmatpush2.bf16.msra.mxu0 0
        %703 = vmatprep.subr.bf16.mxu0 0
        %704 = vmatpush2.bf16.msra.mxu0 0
        %705 = vmatprep.mubr.bf16.mxu0 0
        %706 = vmatmul.mubr.bf16.gmra.mxu0 %v650
        %v707 = vpop.f32.mrf.mxu0
        %v708 = vadd.f32 %v525, %v707
        %v709 = vpop.f32.mrf.mxu0
        %v710 = vpop.f32.mrf.mxu0
        %v711 = vadd.f32 %v530, %v710
        %v712 = vpop.f32.mrf.mxu0
        %713 = vmatprep.mubr.bf16.mxu0 0
        %714 = vmatmul.mubr.bf16.gmra.mxu0 %v653
        %v715 = vpop.f32.mrf.mxu0
        %v716 = vadd.f32 %v535, %v715
        %v717 = vpop.f32.mrf.mxu0
        %v718 = vpop.f32.mrf.mxu0
        %v719 = vadd.f32 %v540, %v718
        %v720 = vpop.f32.mrf.mxu0
        %721 = vmatprep.mubr.bf16.mxu0 0
        %722 = vmatmul.mubr.bf16.gmra.mxu0 %v656
        %v723 = vpop.f32.mrf.mxu0
        %v724 = vadd.f32 %v545, %v723
        %v725 = vpop.f32.mrf.mxu0
        %v726 = vpop.f32.mrf.mxu0
        %v727 = vadd.f32 %v550, %v726
        %v728 = vpop.f32.mrf.mxu0
        %729 = vmatprep.mubr.bf16.mxu0 0
        %730 = vmatmul.mubr.bf16.gmra.mxu0 %v659
        %v731 = vpop.f32.mrf.mxu0
        %v732 = vadd.f32 %v555, %v731
        %v733 = vpop.f32.mrf.mxu0
        %v734 = vpop.f32.mrf.mxu0
        %v735 = vadd.f32 %v560, %v734
        %v736 = vpop.f32.mrf.mxu0
        %737 = vmatprep.mubr.bf16.mxu0 0
        %738 = vmatmul.mubr.bf16.gmra.mxu0 %v662
        %v739 = vpop.f32.mrf.mxu0
        %v740 = vadd.f32 %v565, %v739
        %v741 = vpop.f32.mrf.mxu0
        %v742 = vpop.f32.mrf.mxu0
        %v743 = vadd.f32 %v570, %v742
        %v744 = vpop.f32.mrf.mxu0
        %745 = vmatprep.mubr.bf16.mxu0 0
        %746 = vmatmul.mubr.bf16.gmra.mxu0 %v665
        %v747 = vpop.f32.mrf.mxu0
        %v748 = vadd.f32 %v575, %v747
        %v749 = vpop.f32.mrf.mxu0
        %v750 = vpop.f32.mrf.mxu0
        %v751 = vadd.f32 %v580, %v750
        %v752 = vpop.f32.mrf.mxu0
        %753 = vmatprep.mubr.bf16.mxu0 0
        %754 = vmatmul.mubr.bf16.gmra.mxu0 %v668
        %v755 = vpop.f32.mrf.mxu0
        %v756 = vadd.f32 %v585, %v755
        %v757 = vpop.f32.mrf.mxu0
        %v758 = vpop.f32.mrf.mxu0
        %v759 = vadd.f32 %v590, %v758
        %v760 = vpop.f32.mrf.mxu0
        %761 = vmatprep.mubr.bf16.mxu0 0
        %762 = vmatmul.mubr.bf16.gmra.mxu0 %v671
        %v763 = vpop.f32.mrf.mxu0
        %v764 = vadd.f32 %v595, %v763
        %v765 = vpop.f32.mrf.mxu0
        %v766 = vpop.f32.mrf.mxu0
        %v767 = vadd.f32 %v600, %v766
        %v768 = vpop.f32.mrf.mxu0
        %769 = vdwg.mxu0
        %v770 = vmax.f32 %v708, 0.0
        %v771 = vmax.f32 %v711, 0.0
        %v772 = vmax.f32 %v716, 0.0
        %v773 = vmax.f32 %v719, 0.0
        %v774 = vmax.f32 %v724, 0.0
        %v775 = vmax.f32 %v727, 0.0
        %v776 = vmax.f32 %v732, 0.0
        %v777 = vmax.f32 %v735, 0.0
        %v778 = vmax.f32 %v740, 0.0
        %v779 = vmax.f32 %v743, 0.0
        %v780 = vmax.f32 %v748, 0.0
        %v781 = vmax.f32 %v751, 0.0
        %v782 = vmax.f32 %v756, 0.0
        %v783 = vmax.f32 %v759, 0.0
        %v784 = vmax.f32 %v764, 0.0
        %v785 = vmax.f32 %v767, 0.0
        %v786 = vld [vmem:[%s466] sm:$0xf]
        %v787 = vld [vmem:[%s466 + $0x4] sm:$0xf]
        %v788 = vld [vmem:[%s466 + $0x8] sm:$0xf]
        %v789 = vld [vmem:[%s466 + $0xc] sm:$0xf]
        %v790 = vld [vmem:[%s466 + $0x10] sm:$0xf]
        %v791 = vld [vmem:[%s466 + $0x14] sm:$0xf]
        %v792 = vld [vmem:[%s466 + $0x18] sm:$0xf]
        %v793 = vld [vmem:[%s466 + $0x1c] sm:$0xf]
        %v794 = vld [vmem:[%s466 + $0x20] sm:$0xf]
        %v795 = vld [vmem:[%s466 + $0x24] sm:$0xf]
        %v796 = vld [vmem:[%s466 + $0x28] sm:$0xf]
        %v797 = vld [vmem:[%s466 + $0x2c] sm:$0xf]
        %v798 = vld [vmem:[%s466 + $0x30] sm:$0xf]
        %v799 = vld [vmem:[%s466 + $0x34] sm:$0xf]
        %v800 = vld [vmem:[%s466 + $0x38] sm:$0xf]
        %v801 = vld [vmem:[%s466 + $0x3c] sm:$0xf]
        %v802 = vld [vmem:[%s473] sm:$0xff]
        %v803 = vld [vmem:[%s473 + $0x8] sm:$0xff]
        %v804 = vld [vmem:[%s473 + $0x10] sm:$0xff]
        %v805 = vld [vmem:[%s473 + $0x18] sm:$0xff]
        %v806 = vld [vmem:[%s473 + $0x20] sm:$0xff]
        %v807 = vld [vmem:[%s473 + $0x28] sm:$0xff]
        %v808 = vld [vmem:[%s473 + $0x30] sm:$0xff]
        %v809 = vld [vmem:[%s473 + $0x38] sm:$0xff]
        %v810 = vld [vmem:[%s473 + $0x40] sm:$0xff]
        %v811 = vld [vmem:[%s473 + $0x48] sm:$0xff]
        %v812 = vld [vmem:[%s473 + $0x50] sm:$0xff]
        %v813 = vld [vmem:[%s473 + $0x58] sm:$0xff]
        %v814 = vld [vmem:[%s473 + $0x60] sm:$0xff]
        %v815 = vld [vmem:[%s473 + $0x68] sm:$0xff]
        %v816 = vld [vmem:[%s473 + $0x70] sm:$0xff]
        %v817 = vld [vmem:[%s473 + $0x78] sm:$0xff]
        %v818 = vpack.c.bf16 %v771, %v770
        %v819 = vpack.c.bf16 %v773, %v772
        %v820 = vpack.c.bf16 %v775, %v774
        %v821 = vpack.c.bf16 %v777, %v776
        %v822 = vpack.c.bf16 %v779, %v778
        %v823 = vpack.c.bf16 %v781, %v780
        %v824 = vpack.c.bf16 %v783, %v782
        %v825 = vpack.c.bf16 %v785, %v784
        %827 = vset.pattern.permute.xlu0 0
        %828 = vperm.xlu0 %827, %v802
        %v829 = vpop.permute.xlu0 %828
        %832 = vset.pattern.permute.xlu0 0
        %833 = vperm.xlu0 %832, %v803
        %v834 = vpop.permute.xlu0 %833
        %837 = vset.pattern.permute.xlu0 0
        %838 = vperm.xlu0 %837, %v804
        %v839 = vpop.permute.xlu0 %838
        %842 = vset.pattern.permute.xlu0 0
        %843 = vperm.xlu0 %842, %v805
        %v844 = vpop.permute.xlu0 %843
        %847 = vset.pattern.permute.xlu0 0
        %848 = vperm.xlu0 %847, %v806
        %v849 = vpop.permute.xlu0 %848
        %852 = vset.pattern.permute.xlu0 0
        %853 = vperm.xlu0 %852, %v807
        %v854 = vpop.permute.xlu0 %853
        %857 = vset.pattern.permute.xlu0 0
        %858 = vperm.xlu0 %857, %v808
        %v859 = vpop.permute.xlu0 %858
        %862 = vset.pattern.permute.xlu0 0
        %863 = vperm.xlu0 %862, %v809
        %v864 = vpop.permute.xlu0 %863
        %867 = vset.pattern.permute.xlu0 0
        %868 = vperm.xlu0 %867, %v810
        %v869 = vpop.permute.xlu0 %868
        %872 = vset.pattern.permute.xlu0 0
        %873 = vperm.xlu0 %872, %v811
        %v874 = vpop.permute.xlu0 %873
        %877 = vset.pattern.permute.xlu0 0
        %878 = vperm.xlu0 %877, %v812
        %v879 = vpop.permute.xlu0 %878
        %882 = vset.pattern.permute.xlu0 0
        %883 = vperm.xlu0 %882, %v813
        %v884 = vpop.permute.xlu0 %883
        %887 = vset.pattern.permute.xlu0 0
        %888 = vperm.xlu0 %887, %v814
        %v889 = vpop.permute.xlu0 %888
        %892 = vset.pattern.permute.xlu0 0
        %893 = vperm.xlu0 %892, %v815
        %v894 = vpop.permute.xlu0 %893
        %897 = vset.pattern.permute.xlu0 0
        %898 = vperm.xlu0 %897, %v816
        %v899 = vpop.permute.xlu0 %898
        %902 = vset.pattern.permute.xlu0 0
        %903 = vperm.xlu0 %902, %v817
        %v904 = vpop.permute.xlu0 %903
        %v922 = vunpack.c.l.b16 %v786
        %v923 = vunpack.c.l.b16 %v787
        %v924 = vunpack.c.l.b16 %v788
        %v925 = vunpack.c.l.b16 %v789
        %v926 = vunpack.c.l.b16 %v790
        %v927 = vunpack.c.l.b16 %v791
        %v928 = vunpack.c.l.b16 %v792
        %v929 = vunpack.c.l.b16 %v793
        %v930 = vunpack.c.l.b16 %v794
        %v931 = vunpack.c.l.b16 %v795
        %v932 = vunpack.c.l.b16 %v796
        %v933 = vunpack.c.l.b16 %v797
        %v934 = vunpack.c.l.b16 %v798
        %v935 = vunpack.c.l.b16 %v799
        %v936 = vunpack.c.l.b16 %v800
        %v937 = vunpack.c.l.b16 %v801
        %v938 = vpack.c.b16 %v923, %v922
        %v939 = vpack.c.b16 %v925, %v924
        %v940 = vpack.c.b16 %v927, %v926
        %v941 = vpack.c.b16 %v929, %v928
        %v942 = vpack.c.b16 %v931, %v930
        %v943 = vpack.c.b16 %v933, %v932
        %v944 = vpack.c.b16 %v935, %v934
        %v945 = vpack.c.b16 %v937, %v936
        %954 = vmatprep.subr.bf16.mxu0 0
        %955 = vmatpush1.bf16.msra.mxu0 %v825
        %956 = vmatprep.subr.bf16.mxu0 0
        %957 = vmatpush1.bf16.msra.mxu0 %v824
        %958 = vmatprep.subr.bf16.mxu0 0
        %959 = vmatpush1.bf16.msra.mxu0 %v823
        %960 = vmatprep.subr.bf16.mxu0 0
        %961 = vmatpush1.bf16.msra.mxu0 %v822
        %962 = vmatprep.subr.bf16.mxu0 0
        %963 = vmatpush1.bf16.msra.mxu0 %v821
        %964 = vmatprep.subr.bf16.mxu0 0
        %965 = vmatpush1.bf16.msra.mxu0 %v820
        %966 = vmatprep.subr.bf16.mxu0 0
        %967 = vmatpush1.bf16.msra.mxu0 %v819
        %968 = vmatprep.subr.bf16.mxu0 0
        %969 = vmatpush1.bf16.msra.mxu0 %v818
        %970 = vmatprep.subr.bf16.mxu0 0
        %971 = vmatpush2.bf16.msra.mxu0 0
        %972 = vmatprep.subr.bf16.mxu0 0
        %973 = vmatpush2.bf16.msra.mxu0 0
        %974 = vmatprep.subr.bf16.mxu0 0
        %975 = vmatpush2.bf16.msra.mxu0 0
        %976 = vmatprep.subr.bf16.mxu0 0
        %977 = vmatpush2.bf16.msra.mxu0 0
        %978 = vmatprep.subr.bf16.mxu0 0
        %979 = vmatpush2.bf16.msra.mxu0 0
        %980 = vmatprep.subr.bf16.mxu0 0
        %981 = vmatpush2.bf16.msra.mxu0 0
        %982 = vmatprep.subr.bf16.mxu0 0
        %983 = vmatpush2.bf16.msra.mxu0 0
        %984 = vmatprep.subr.bf16.mxu0 0
        %985 = vmatpush2.bf16.msra.mxu0 0
        %986 = vmatprep.mubr.bf16.mxu0 0
        %987 = vmatmul.mubr.bf16.gmra.mxu0 %v938
        %v988 = vpop.f32.mrf.mxu0
        %v989 = vadd.f32 %v829, %v988
        %v990 = vpop.f32.mrf.mxu0
        %v991 = vpop.f32.mrf.mxu0
        %v992 = vadd.f32 %v834, %v991
        %v993 = vpop.f32.mrf.mxu0
        %994 = vmatprep.mubr.bf16.mxu0 0
        %995 = vmatmul.mubr.bf16.gmra.mxu0 %v939
        %v996 = vpop.f32.mrf.mxu0
        %v997 = vadd.f32 %v839, %v996
        %v998 = vpop.f32.mrf.mxu0
        %v999 = vpop.f32.mrf.mxu0
        %v1000 = vadd.f32 %v844, %v999
        %v1001 = vpop.f32.mrf.mxu0
        %1002 = vmatprep.mubr.bf16.mxu0 0
        %1003 = vmatmul.mubr.bf16.gmra.mxu0 %v940
        %v1004 = vpop.f32.mrf.mxu0
        %v1005 = vadd.f32 %v849, %v1004
        %v1006 = vpop.f32.mrf.mxu0
        %v1007 = vpop.f32.mrf.mxu0
        %v1008 = vadd.f32 %v854, %v1007
        %v1009 = vpop.f32.mrf.mxu0
        %1010 = vmatprep.mubr.bf16.mxu0 0
        %1011 = vmatmul.mubr.bf16.gmra.mxu0 %v941
        %v1012 = vpop.f32.mrf.mxu0
        %v1013 = vadd.f32 %v859, %v1012
        %v1014 = vpop.f32.mrf.mxu0
        %v1015 = vpop.f32.mrf.mxu0
        %v1016 = vadd.f32 %v864, %v1015
        %v1017 = vpop.f32.mrf.mxu0
        %1018 = vmatprep.mubr.bf16.mxu0 0
        %1019 = vmatmul.mubr.bf16.gmra.mxu0 %v942
        %v1020 = vpop.f32.mrf.mxu0
        %v1021 = vadd.f32 %v869, %v1020
        %v1022 = vpop.f32.mrf.mxu0
        %v1023 = vpop.f32.mrf.mxu0
        %v1024 = vadd.f32 %v874, %v1023
        %v1025 = vpop.f32.mrf.mxu0
        %1026 = vmatprep.mubr.bf16.mxu0 0
        %1027 = vmatmul.mubr.bf16.gmra.mxu0 %v943
        %v1028 = vpop.f32.mrf.mxu0
        %v1029 = vadd.f32 %v879, %v1028
        %v1030 = vpop.f32.mrf.mxu0
        %v1031 = vpop.f32.mrf.mxu0
        %v1032 = vadd.f32 %v884, %v1031
        %v1033 = vpop.f32.mrf.mxu0
        %1034 = vmatprep.mubr.bf16.mxu0 0
        %1035 = vmatmul.mubr.bf16.gmra.mxu0 %v944
        %v1036 = vpop.f32.mrf.mxu0
        %v1037 = vadd.f32 %v889, %v1036
        %v1038 = vpop.f32.mrf.mxu0
        %v1039 = vpop.f32.mrf.mxu0
        %v1040 = vadd.f32 %v894, %v1039
        %v1041 = vpop.f32.mrf.mxu0
        %1042 = vmatprep.mubr.bf16.mxu0 0
        %1043 = vmatmul.mubr.bf16.gmra.mxu0 %v945
        %v1044 = vpop.f32.mrf.mxu0
        %v1045 = vadd.f32 %v899, %v1044
        %v1046 = vpop.f32.mrf.mxu0
        %v1047 = vpop.f32.mrf.mxu0
        %v1048 = vadd.f32 %v904, %v1047
        %v1049 = vpop.f32.mrf.mxu0
        %1050 = vdwg.mxu0
        %v1051 = vmax.f32 %v989, 0.0
        %v1052 = vmax.f32 %v992, 0.0
        %v1053 = vmax.f32 %v997, 0.0
        %v1054 = vmax.f32 %v1000, 0.0
        %v1055 = vmax.f32 %v1005, 0.0
        %v1056 = vmax.f32 %v1008, 0.0
        %v1057 = vmax.f32 %v1013, 0.0
        %v1058 = vmax.f32 %v1016, 0.0
        %v1059 = vmax.f32 %v1021, 0.0
        %v1060 = vmax.f32 %v1024, 0.0
        %v1061 = vmax.f32 %v1029, 0.0
        %v1062 = vmax.f32 %v1032, 0.0
        %v1063 = vmax.f32 %v1037, 0.0
        %v1064 = vmax.f32 %v1040, 0.0
        %v1065 = vmax.f32 %v1045, 0.0
        %v1066 = vmax.f32 %v1048, 0.0
        %v1067 = vld [vmem:[%s479] sm:$0xf]
        %v1068 = vld [vmem:[%s485] sm:$0xff]
        %v1069 = vpack.c.bf16 %v1052, %v1051
        %v1070 = vpack.c.bf16 %v1054, %v1053
        %v1071 = vpack.c.bf16 %v1056, %v1055
        %v1072 = vpack.c.bf16 %v1058, %v1057
        %v1073 = vpack.c.bf16 %v1060, %v1059
        %v1074 = vpack.c.bf16 %v1062, %v1061
        %v1075 = vpack.c.bf16 %v1064, %v1063
        %v1076 = vpack.c.bf16 %v1066, %v1065
        %1078 = vset.pattern.permute.xlu0 0
        %1079 = vperm.xlu0 %1078, %v1068
        %v1080 = vpop.permute.xlu0 %1079
        %1082 = vmatprep.subr.bf16.mxu0 0
        %1083 = vmatpush1.bf16.msra.mxu0 %v1076
        %1084 = vmatprep.subr.bf16.mxu0 0
        %1085 = vmatpush1.bf16.msra.mxu0 %v1075
        %1086 = vmatprep.subr.bf16.mxu0 0
        %1087 = vmatpush1.bf16.msra.mxu0 %v1074
        %1088 = vmatprep.subr.bf16.mxu0 0
        %1089 = vmatpush1.bf16.msra.mxu0 %v1073
        %1090 = vmatprep.subr.bf16.mxu0 0
        %1091 = vmatpush1.bf16.msra.mxu0 %v1072
        %1092 = vmatprep.subr.bf16.mxu0 0
        %1093 = vmatpush1.bf16.msra.mxu0 %v1071
        %1094 = vmatprep.subr.bf16.mxu0 0
        %1095 = vmatpush1.bf16.msra.mxu0 %v1070
        %1096 = vmatprep.subr.bf16.mxu0 0
        %1097 = vmatpush1.bf16.msra.mxu0 %v1069
        %1098 = vmatprep.subr.bf16.mxu0 0
        %1099 = vmatpush2.bf16.msra.mxu0 0
        %1100 = vmatprep.subr.bf16.mxu0 0
        %1101 = vmatpush2.bf16.msra.mxu0 0
        %1102 = vmatprep.subr.bf16.mxu0 0
        %1103 = vmatpush2.bf16.msra.mxu0 0
        %1104 = vmatprep.subr.bf16.mxu0 0
        %1105 = vmatpush2.bf16.msra.mxu0 0
        %1106 = vmatprep.subr.bf16.mxu0 0
        %1107 = vmatpush2.bf16.msra.mxu0 0
        %1108 = vmatprep.subr.bf16.mxu0 0
        %1109 = vmatpush2.bf16.msra.mxu0 0
        %1110 = vmatprep.subr.bf16.mxu0 0
        %1111 = vmatpush2.bf16.msra.mxu0 0
        %1112 = vmatprep.subr.bf16.mxu0 0
        %1113 = vmatpush2.bf16.msra.mxu0 0
        %1114 = vmatprep.mubr.bf16.mxu0 0
        %1115 = vmatmul.mubr.bf16.gmra.mxu0 %v1067
        %v1116 = vpop.f32.mrf.mxu0
        %v1117 = vadd.f32 %v1080, %v1116
        %v1118 = vpop.f32.mrf.mxu0
        %v1119 = vpop.f32.mrf.mxu0
        %v1120 = vpop.f32.mrf.mxu0
        %1121 = vdwg.mxu0
        %1122 = vst [vmem:[%s446] sm:$0xff] %v1117
        %s1123 = sand.u32 %s230, 1
        %s1124 = scalar_lea.sflag [#allocation6], %s1123
        %s1125 = sand.u32 %s230, 1
        %s1126 = smul.addr %s1125, 8
        %s1127 = scalar_lea.vmem [#allocation5], %s1126
        // Predicated region
        $region90: #{tpu_custom_call.1} parent=84 // pred_check
          %p1128 = pneg %p240
        $region91: #{tpu_custom_call.1} parent=84 // pred_check_branch
          %1130 = sbr.rel (%p1128) target = $region93
        $region92: #{tpu_custom_call.1} parent=84 // pred_region
          %s1132 = ssub.s32 128, 128
          %1133 = vsyncadd %s1124, %s1132
          %s1134 = smul.addr %s28, 128
          %s1135 = scalar_lea.hbm %s8, %s1134
          %s1137 = sshll.u32 %s1127, 4
          %s1138 = int_to_ptr.vmem [resolvable:$true] %s1137
          %1140 = dma.vmem_to_hbm [thread:$0]  %s1138, 128, %s1135, %s1124
        $region93: #{tpu_custom_call.1} parent=84 // pred_fallthru
          _
      $region85: #{tpu_custom_call.1} parent=5 // pred_fallthru
        _
      %p1141 = scmp.le.s32.totalorder 2, %s23
      // Predicated region
      $region94: #{tpu_custom_call.1} parent=5 // pred_check
        %p1142 = pneg %p1141
      $region95: #{tpu_custom_call.1} parent=5 // pred_check_branch
        %1144 = sbr.rel (%p1142) target = $region97
      $region96: #{tpu_custom_call.1} parent=5 // pred_region
        %s1145 = ssub.s32 %s23, 2
        // Predicated region
        $region98: #{tpu_custom_call.1} parent=96 // pred_check
          %p1146 = pneg %p246
        $region99: #{tpu_custom_call.1} parent=96 // pred_check_branch
          %1148 = sbr.rel (%p1146) target = $region101
        $region100: #{tpu_custom_call.1} parent=96 // pred_region
          %s1149 = sand.u32 %s231, 1
          %s1150 = scalar_lea.sflag [#allocation6], %s1149
          %s1151 = sand.u32 %s231, 1
          %s1152 = smul.addr %s1151, 8
          %s1153 = scalar_lea.vmem [#allocation5], %s1152
          %1154 = dma.done %s1150, 128
        $region101: #{tpu_custom_call.1} parent=96 // pred_fallthru
          _
      $region97: #{tpu_custom_call.1} parent=5 // pred_fallthru
        _
    $region6: #{tpu_custom_call.1} parent=1 // loop_footer
      %s27 = sadd.s32 1, %s23
    $region7: #{tpu_custom_call.1} parent=1 // loop_footer_branch
      %22 = sbr.rel target = $region3
    $region8: #{tpu_custom_call.1} parent=1 // loop_exit
      _
    %1155 = vsyncpa [#allocation6], 1
    %s1156 = scalar_lea.sflag [#allocation6], 1
    %1157 = vsyncpa %s1156, 1

</llo_original>
